<compile_context>
chip_gen: v7x
topology: tpu7x:2x2x1
jax: 0.10.0
libtpu: 0.0.40
codegen_flags: <defaults>
</compile_context>

<pallas_src>
import functools
import math

import jax
import jax.numpy as jnp
from jax.experimental import pallas as pl
from jax.experimental.pallas import tpu as pltpu


def _round_up(x, m):
    return ((x + m - 1) // m) * m


def _make_mlp_kernel(num_layers):
    """Fused MLP kernel.

    Kernel args: (x_ref, w0, b0, w1, b1, ..., w_{L-1}, b_{L-1}, out_ref)
      x_ref : [TB, features]            (batch-major tile, straight from HBM)
      w_i   : [out_dim, in_dim]         (PyTorch-native layout)
      b_i   : [out_dim, 1]
      out   : [1, TB]                   (lane-dense)
    Hidden layers use ReLU, last layer uses sigmoid (matches PyTorch forward).
    All intermediate activations are features-major [dim, TB] so the batch
    tile stays on the MXU lane/output axis.
    """

    def kernel(x_ref, *refs):
        out_ref = refs[-1]
        param_refs = refs[:-1]

        x = x_ref[...]                                   # [TB, features] f32
        w0 = param_refs[0][...]                          # [out0, features]
        b0 = param_refs[1][...]                          # [out0, 1]
        # Contract feature axes of both operands -> [out0, TB]; avoids any
        # explicit transpose of x (in HBM or in VMEM).
        h = jax.lax.dot_general(
            w0, x, (((1,), (1,)), ((), ())),
            preferred_element_type=jnp.float32) + b0
        if num_layers > 1:
            h = jnp.maximum(h, 0.0)                      # F.relu
        else:
            h = jax.nn.sigmoid(h)                        # torch.sigmoid

        for i in range(1, num_layers):
            w = param_refs[2 * i][...]                   # [out, in]
            b = param_refs[2 * i + 1][...]               # [out, 1]
            h = jnp.dot(w, h, preferred_element_type=jnp.float32) + b
            if i < num_layers - 1:
                h = jnp.maximum(h, 0.0)
            else:
                h = jax.nn.sigmoid(h)

        out_ref[...] = h.astype(out_ref.dtype)           # [1, TB] lane-dense

    return kernel


def init_ctest_mlr_params(config, input_dim=61, seed=0):
    """nn.Linear default init (uniform +/- 1/sqrt(fan_in)).

    Weights stored PyTorch-native [out, in]; biases stored [out, 1] so they
    broadcast over the lane (batch) axis inside the kernel.
    Returns a flat list [w0, b0, w1, b1, ...]."""
    dims = [input_dim] + [v for _, v in sorted(config.items())] + [1]
    key = jax.random.PRNGKey(seed)
    params = []
    for i in range(len(dims) - 1):
        fan_in, fan_out = dims[i], dims[i + 1]
        key, wk, bk = jax.random.split(key, 3)
        bound = 1.0 / math.sqrt(fan_in)
        w = jax.random.uniform(wk, (fan_out, fan_in), jnp.float32, -bound, bound)
        b = jax.random.uniform(bk, (fan_out, 1), jnp.float32, -bound, bound)
        params.extend([w, b])
    return params


@functools.partial(jax.jit, static_argnames=("block_batch",))
def ctest_mlr_forward(x, params, *, block_batch=2048):
    """Fused MLP forward. x: [batch, features] f32 -> [batch, 1] f32."""
    batch, features = x.shape
    num_layers = len(params) // 2

    # Lane-dense batch tile: multiple of 128, capped at block_batch.
    tb = min(block_batch, _round_up(batch, 128))
    padded = _round_up(batch, tb)
    grid = padded // tb

    # Pad batch only when it doesn't divide the tile (no transpose needed).
    if padded != batch:
        x = jnp.pad(x, ((0, padded - batch), (0, 0)))

    kernel = _make_mlp_kernel(num_layers)

    in_specs = [pl.BlockSpec((tb, features), lambda i: (i, 0))]
    for p in params:
        # Weights/biases: full-array blocks, resident across all grid steps.
        in_specs.append(pl.BlockSpec(p.shape, lambda i: (0, 0)))

    flops = 2 * batch * sum(int(params[2 * i].shape[0] * params[2 * i].shape[1])
                            for i in range(num_layers))
    param_bytes = sum(int(p.size) * 4 for p in params)
    bytes_accessed = int(batch * features * 4 + param_bytes + batch * 4)

    out = pl.pallas_call(
        kernel,
        grid=(grid,),
        out_shape=jax.ShapeDtypeStruct((1, padded), jnp.float32),
        in_specs=in_specs,
        out_specs=pl.BlockSpec((1, tb), lambda i: (0, i)),
        compiler_params=pltpu.CompilerParams(
            dimension_semantics=("parallel",),   # shard batch tiles on v7x's 2 TCs
        ),
        cost_estimate=pl.CostEstimate(
            flops=flops,
            transcendentals=batch,               # sigmoid exp
            bytes_accessed=bytes_accessed,
        ),
    )(x, *params)

    return out[0, :batch].reshape(batch, 1)


def _reference_forward(x, params, num_layers):
    """Pure-JAX reference mirroring the PyTorch forward pass (batch-major)."""
    h = x
    for i in range(num_layers):
        w, b = params[2 * i], params[2 * i + 1]        # w: [out, in], b: [out, 1]
        h = h @ w.T + b.reshape(1, -1)
        if i < num_layers - 1:
            h = jnp.maximum(h, 0.0)
        else:
            h = jax.nn.sigmoid(h)
    return h


if __name__ == "__main__":
    # Small config consistent with the module: two hidden layers + output.
    config = {"layer_a": 32, "layer_b": 16}
    input_dim = 61
    batch = 4

    params = init_ctest_mlr_params(config, input_dim=input_dim, seed=0)
    num_layers = len(params) // 2  # hidden layers + final Linear(->1)

    key = jax.random.PRNGKey(0)
    x = jax.random.normal(key, (batch, input_dim), dtype=jnp.float32)

    out = ctest_mlr_forward(x, params)
    out = jax.block_until_ready(out)

    ref = _reference_forward(x, params, num_layers)
    assert out.shape == (batch, 1), out.shape
    assert jnp.allclose(out, ref, atol=1e-5, rtol=1e-5), (out, ref)

    # Also exercise a batch that spans multiple grid tiles (and padding).
    big_batch = 300
    xb = jax.random.normal(jax.random.PRNGKey(1), (big_batch, input_dim),
                           dtype=jnp.float32)
    outb = jax.block_until_ready(ctest_mlr_forward(xb, params, block_batch=128))
    refb = _reference_forward(xb, params, num_layers)
    assert outb.shape == (big_batch, 1), outb.shape
    assert jnp.allclose(outb, refb, atol=1e-5, rtol=1e-5)

    print("KERNEL_OK")
</pallas_src>

<mosaic_0001>
module attributes {stable_mosaic.version = 11 : i64} {
  func.func @kernel(%arg0: i32, %arg1: memref<128x61xf32, #tpu.memory_space<vmem>>, %arg2: memref<32x61xf32, #tpu.memory_space<vmem>>, %arg3: memref<32x1xf32, #tpu.memory_space<vmem>>, %arg4: memref<16x32xf32, #tpu.memory_space<vmem>>, %arg5: memref<16x1xf32, #tpu.memory_space<vmem>>, %arg6: memref<1x16xf32, #tpu.memory_space<vmem>>, %arg7: memref<1x1xf32, #tpu.memory_space<vmem>>, %arg8: memref<1x128xf32, #tpu.memory_space<vmem>>) attributes {dimension_semantics = [#tpu.dimension_semantics<parallel>], iteration_bounds = array<i64: 1>, scalar_prefetch = 0 : i64, scratch_operands = 0 : i64, tpu.core_type = #tpu.core_type<tc>, window_params = [{transform_indices = @transform_0, window_bounds = array<i64: 128, 61>}, {pipeline_mode = #tpu.pipeline_mode<synchronous>, transform_indices = @transform_1, window_bounds = array<i64: 32, 61>}, {pipeline_mode = #tpu.pipeline_mode<synchronous>, transform_indices = @transform_2, window_bounds = array<i64: 32, 1>}, {pipeline_mode = #tpu.pipeline_mode<synchronous>, transform_indices = @transform_3, window_bounds = array<i64: 16, 32>}, {pipeline_mode = #tpu.pipeline_mode<synchronous>, transform_indices = @transform_4, window_bounds = array<i64: 16, 1>}, {pipeline_mode = #tpu.pipeline_mode<synchronous>, transform_indices = @transform_5, window_bounds = array<i64: 1, 16>}, {pipeline_mode = #tpu.pipeline_mode<synchronous>, transform_indices = @transform_6, window_bounds = array<i64: 1, 1>}, {transform_indices = @transform_7, window_bounds = array<i64: 1, 128>}]} {
    %c0 = arith.constant 0 : index
    %c0_0 = arith.constant 0 : index
    %0 = vector.load %arg1[%c0, %c0_0] : memref<128x61xf32, #tpu.memory_space<vmem>>, vector<128x61xf32>
    %c0_1 = arith.constant 0 : index
    %c0_2 = arith.constant 0 : index
    %1 = vector.load %arg2[%c0_1, %c0_2] : memref<32x61xf32, #tpu.memory_space<vmem>>, vector<32x61xf32>
    %c0_3 = arith.constant 0 : index
    %c0_4 = arith.constant 0 : index
    %2 = vector.load %arg3[%c0_3, %c0_4] : memref<32x1xf32, #tpu.memory_space<vmem>>, vector<32x1xf32>
    %cst = arith.constant dense<0.000000e+00> : vector<32x128xf32>
    %3 = tpu.matmul %1, %0, %cst {dimension_numbers = #tpu.dot_dimension_numbers<[1], [1], [0], [0], [0, 0, 1, 0], [], []>} : vector<32x61xf32>, vector<128x61xf32>, vector<32x128xf32> -> vector<32x128xf32>
    %4 = vector.broadcast %2 : vector<32x1xf32> to vector<32x128xf32>
    %5 = arith.addf %3, %4 : vector<32x128xf32>
    %cst_5 = arith.constant 0.000000e+00 : f32
    %6 = vector.broadcast %cst_5 : f32 to vector<32x128xf32>
    %7 = arith.maximumf %5, %6 : vector<32x128xf32>
    %c0_6 = arith.constant 0 : index
    %c0_7 = arith.constant 0 : index
    %8 = vector.load %arg4[%c0_6, %c0_7] : memref<16x32xf32, #tpu.memory_space<vmem>>, vector<16x32xf32>
    %c0_8 = arith.constant 0 : index
    %c0_9 = arith.constant 0 : index
    %9 = vector.load %arg5[%c0_8, %c0_9] : memref<16x1xf32, #tpu.memory_space<vmem>>, vector<16x1xf32>
    %cst_10 = arith.constant dense<0.000000e+00> : vector<16x128xf32>
    %10 = tpu.matmul %8, %7, %cst_10 {dimension_numbers = #tpu.dot_dimension_numbers<[1], [0], [0], [1], [0, 0, 1, 1], [], []>} : vector<16x32xf32>, vector<32x128xf32>, vector<16x128xf32> -> vector<16x128xf32>
    %11 = vector.broadcast %9 : vector<16x1xf32> to vector<16x128xf32>
    %12 = arith.addf %10, %11 : vector<16x128xf32>
    %cst_11 = arith.constant 0.000000e+00 : f32
    %13 = vector.broadcast %cst_11 : f32 to vector<16x128xf32>
    %14 = arith.maximumf %12, %13 : vector<16x128xf32>
    %c0_12 = arith.constant 0 : index
    %c0_13 = arith.constant 0 : index
    %15 = vector.load %arg6[%c0_12, %c0_13] : memref<1x16xf32, #tpu.memory_space<vmem>>, vector<1x16xf32>
    %c0_14 = arith.constant 0 : index
    %c0_15 = arith.constant 0 : index
    %16 = vector.load %arg7[%c0_14, %c0_15] : memref<1x1xf32, #tpu.memory_space<vmem>>, vector<1x1xf32>
    %cst_16 = arith.constant dense<0.000000e+00> : vector<1x128xf32>
    %17 = tpu.matmul %15, %14, %cst_16 {dimension_numbers = #tpu.dot_dimension_numbers<[1], [0], [0], [1], [0, 0, 1, 1], [], []>} : vector<1x16xf32>, vector<16x128xf32>, vector<1x128xf32> -> vector<1x128xf32>
    %18 = vector.broadcast %16 : vector<1x1xf32> to vector<1x128xf32>
    %19 = arith.addf %17, %18 : vector<1x128xf32>
    %20 = arith.negf %19 : vector<1x128xf32>
    %21 = math.exp %20 : vector<1x128xf32>
    %cst_17 = arith.constant 1.000000e+00 : f32
    %22 = vector.broadcast %cst_17 : f32 to vector<1x128xf32>
    %23 = arith.addf %22, %21 : vector<1x128xf32>
    %24 = arith.divf %22, %23 : vector<1x128xf32>
    %c0_18 = arith.constant 0 : index
    %c0_19 = arith.constant 0 : index
    %25 = vector.load %arg8[%c0_18, %c0_19] : memref<1x128xf32, #tpu.memory_space<vmem>>, vector<1x128xf32>
    tpu.vector_store %arg8[%c0_18, %c0_19], %24 {strides = array<i32>} : memref<1x128xf32, #tpu.memory_space<vmem>>, vector<1x128xf32>,
    return
  }
  func.func @transform_0(%arg0: i32) -> (i32, i32) {
    %c0_i32 = arith.constant 0 : i32
    %c0_i32_0 = arith.constant 0 : i32
    return %arg0, %c0_i32 : i32, i32
  }
  func.func @transform_1(%arg0: i32) -> (i32, i32) {
    %c0_i32 = arith.constant 0 : i32
    %c0_i32_0 = arith.constant 0 : i32
    %c0_i32_1 = arith.constant 0 : i32
    return %c0_i32, %c0_i32_0 : i32, i32
  }
  func.func @transform_2(%arg0: i32) -> (i32, i32) {
    %c0_i32 = arith.constant 0 : i32
    %c0_i32_0 = arith.constant 0 : i32
    %c0_i32_1 = arith.constant 0 : i32
    return %c0_i32, %c0_i32_0 : i32, i32
  }
  func.func @transform_3(%arg0: i32) -> (i32, i32) {
    %c0_i32 = arith.constant 0 : i32
    %c0_i32_0 = arith.constant 0 : i32
    %c0_i32_1 = arith.constant 0 : i32
    return %c0_i32, %c0_i32_0 : i32, i32
  }
  func.func @transform_4(%arg0: i32) -> (i32, i32) {
    %c0_i32 = arith.constant 0 : i32
    %c0_i32_0 = arith.constant 0 : i32
    %c0_i32_1 = arith.constant 0 : i32
    return %c0_i32, %c0_i32_0 : i32, i32
  }
  func.func @transform_5(%arg0: i32) -> (i32, i32) {
    %c0_i32 = arith.constant 0 : i32
    %c0_i32_0 = arith.constant 0 : i32
    %c0_i32_1 = arith.constant 0 : i32
    return %c0_i32, %c0_i32_0 : i32, i32
  }
  func.func @transform_6(%arg0: i32) -> (i32, i32) {
    %c0_i32 = arith.constant 0 : i32
    %c0_i32_0 = arith.constant 0 : i32
    %c0_i32_1 = arith.constant 0 : i32
    return %c0_i32, %c0_i32_0 : i32, i32
  }
  func.func @transform_7(%arg0: i32) -> (i32, i32) {
    %c0_i32 = arith.constant 0 : i32
    %c0_i32_0 = arith.constant 0 : i32
    return %c0_i32, %arg0 : i32, i32
  }
}

</mosaic_0001>

<llo_original>
// kernel: ctest_mlr_forward.1
$region0: #{ctest_mlr_forward.1}
  #allocation0 [shape = 'u32[]', space=smem, size = 0x4, offset = 0x4, fixed_abs, tag = 'smem constant byte address 0x4 - core index']
  #allocation1 [shape = 'u32[144,128]{1,0:T(1,128)}', space=vmem, size = 0x12000, scoped, tag = 'internal scratch']
  #allocation2 [shape = 'f32[1,1]{1,0:T(1,128)S(1)}', space=vmem, size = 0x200, scoped, tag = 'scoped memory for ctest_mlr_forward.1']
  %s0 = inlined_call_operand.vmem [shape: f32[128,61], index: 0, kind: input, shape index: {}]
  %s1 = inlined_call_operand.vmem [shape: f32[32,61], index: 1, kind: input, shape index: {}]
  %s2 = inlined_call_operand.vmem [shape: f32[32,1], index: 2, kind: input, shape index: {}]
  %s3 = inlined_call_operand.vmem [shape: f32[16,32], index: 3, kind: input, shape index: {}]
  %s4 = inlined_call_operand.vmem [shape: f32[16,1], index: 4, kind: input, shape index: {}]
  %s5 = inlined_call_operand.vmem [shape: f32[1,16], index: 5, kind: input, shape index: {}]
  %s6 = inlined_call_operand.<no memory space> [shape: f32[1,1], index: 6, kind: input, shape index: {}]
  %s7 = inlined_call_operand.vmem [shape: f32[1,128], index: 7, kind: output, shape index: {}]
  %s8 = sld [smem:[#allocation0]]
  $region38: #{ctest_mlr_forward.1} parent=0
    _
  %s10 = ssub.s32 1, %s8
  %s11 = scalar_select 0, %s10, %s8
  %v12 = vstv %s6
  %13 = vst [vmem:[#allocation2] sm:$0x1] %v12
  // Predicated region
  $region2: #{ctest_mlr_forward.1} parent=0 // pred_check
    _
  $region3: #{ctest_mlr_forward.1} parent=0 // pred_check_branch
    %15 = sbr.rel (0) target = $region5
  $region4: #{ctest_mlr_forward.1} parent=0 // pred_region
    _
  $region5: #{ctest_mlr_forward.1} parent=0 // pred_fallthru
    _
  // Predicated region
  $region6: #{ctest_mlr_forward.1} parent=0 // pred_check
    _
  $region7: #{ctest_mlr_forward.1} parent=0 // pred_check_branch
    %17 = sbr.rel (0) target = $region9
  $region8: #{ctest_mlr_forward.1} parent=0 // pred_region
    _
  $region9: #{ctest_mlr_forward.1} parent=0 // pred_fallthru
    _
  // Predicated region
  $region10: #{ctest_mlr_forward.1} parent=0 // pred_check
    _
  $region11: #{ctest_mlr_forward.1} parent=0 // pred_check_branch
    %19 = sbr.rel (0) target = $region13
  $region12: #{ctest_mlr_forward.1} parent=0 // pred_region
    _
  $region13: #{ctest_mlr_forward.1} parent=0 // pred_fallthru
    _
  // Predicated region
  $region14: #{ctest_mlr_forward.1} parent=0 // pred_check
    _
  $region15: #{ctest_mlr_forward.1} parent=0 // pred_check_branch
    %21 = sbr.rel (0) target = $region17
  $region16: #{ctest_mlr_forward.1} parent=0 // pred_region
    _
  $region17: #{ctest_mlr_forward.1} parent=0 // pred_fallthru
    _
  // Predicated region
  $region18: #{ctest_mlr_forward.1} parent=0 // pred_check
    _
  $region19: #{ctest_mlr_forward.1} parent=0 // pred_check_branch
    %23 = sbr.rel (0) target = $region21
  $region20: #{ctest_mlr_forward.1} parent=0 // pred_region
    _
  $region21: #{ctest_mlr_forward.1} parent=0 // pred_fallthru
    _
  // Predicated region
  $region22: #{ctest_mlr_forward.1} parent=0 // pred_check
    _
  $region23: #{ctest_mlr_forward.1} parent=0 // pred_check_branch
    %25 = sbr.rel (0) target = $region25
  $region24: #{ctest_mlr_forward.1} parent=0 // pred_region
    _
  $region25: #{ctest_mlr_forward.1} parent=0 // pred_fallthru
    _
  // Predicated region
  $region26: #{ctest_mlr_forward.1} parent=0 // pred_check
    _
  $region27: #{ctest_mlr_forward.1} parent=0 // pred_check_branch
    %27 = sbr.rel (0) target = $region29
  $region28: #{ctest_mlr_forward.1} parent=0 // pred_region
    _
  $region29: #{ctest_mlr_forward.1} parent=0 // pred_fallthru
    _
  %v28 = vld [vmem:[%s0] sm:$0xff]
  %v29 = vld [vmem:[%s0 + $0x8] sm:$0xff]
  %v30 = vld [vmem:[%s0 + $0x10] sm:$0xff]
  %v31 = vld [vmem:[%s0 + $0x18] sm:$0xff]
  %v32 = vld [vmem:[%s0 + $0x20] sm:$0xff]
  %v33 = vld [vmem:[%s0 + $0x28] sm:$0xff]
  %v34 = vld [vmem:[%s0 + $0x30] sm:$0xff]
  %v35 = vld [vmem:[%s0 + $0x38] sm:$0xff]
  %v36 = vld [vmem:[%s0 + $0x40] sm:$0xff]
  %v37 = vld [vmem:[%s0 + $0x48] sm:$0xff]
  %v38 = vld [vmem:[%s0 + $0x50] sm:$0xff]
  %v39 = vld [vmem:[%s0 + $0x58] sm:$0xff]
  %v40 = vld [vmem:[%s0 + $0x60] sm:$0xff]
  %v41 = vld [vmem:[%s0 + $0x68] sm:$0xff]
  %v42 = vld [vmem:[%s0 + $0x70] sm:$0xff]
  %v43 = vld [vmem:[%s0 + $0x78] sm:$0xff]
  %v44 = vld [vmem:[%s1] sm:$0xff]
  %v45 = vld [vmem:[%s1 + $0x8] sm:$0xff]
  %v46 = vld [vmem:[%s1 + $0x10] sm:$0xff]
  %v47 = vld [vmem:[%s1 + $0x18] sm:$0xff]
  %v48 = vld [vmem:[%s2] sm:$0xff]
  %v49 = vld [vmem:[%s2 + $0x8] sm:$0xff]
  %v50 = vld [vmem:[%s2 + $0x10] sm:$0xff]
  %v51 = vld [vmem:[%s2 + $0x18] sm:$0xff]
  %53 = vset.pattern.permute.xlu0 0
  %54 = vperm.xlu0 %53, %v48
  %v55 = vpop.permute.xlu0 %54
  %58 = vset.pattern.permute.xlu0 0
  %59 = vperm.xlu0 %58, %v49
  %v60 = vpop.permute.xlu0 %59
  %63 = vset.pattern.permute.xlu0 0
  %64 = vperm.xlu0 %63, %v50
  %v65 = vpop.permute.xlu0 %64
  %68 = vset.pattern.permute.xlu0 0
  %69 = vperm.xlu0 %68, %v51
  %v70 = vpop.permute.xlu0 %69
  %vm72 = vcmask 498688
  %v74 = vsel %vm72, %v44, 0
  %v77 = vsel %vm72, %v45, 0
  %v80 = vsel %vm72, %v46, 0
  %v83 = vsel %vm72, %v47, 0
  %v86 = vsel %vm72, %v28, 0
  %v89 = vsel %vm72, %v29, 0
  %v92 = vsel %vm72, %v30, 0
  %v95 = vsel %vm72, %v31, 0
  %v98 = vsel %vm72, %v32, 0
  %v101 = vsel %vm72, %v33, 0
  %v104 = vsel %vm72, %v34, 0
  %v107 = vsel %vm72, %v35, 0
  %v110 = vsel %vm72, %v36, 0
  %v113 = vsel %vm72, %v37, 0
  %v116 = vsel %vm72, %v38, 0
  %v119 = vsel %vm72, %v39, 0
  %v122 = vsel %vm72, %v40, 0
  %v125 = vsel %vm72, %v41, 0
  %v128 = vsel %vm72, %v42, 0
  %v131 = vsel %vm72, %v43, 0
  %133 = vmatprep.subr.mxu0 0.0
  %134 = vmatpush1.xpose.msra.mxu0 %v86
  %135 = vmatprep.subr.mxu0 0.0
  %136 = vmatpush1.xpose.msra.mxu0 %v89
  %137 = vmatprep.subr.mxu0 0.0
  %138 = vmatpush1.xpose.msra.mxu0 %v92
  %139 = vmatprep.subr.mxu0 0.0
  %140 = vmatpush1.xpose.msra.mxu0 %v95
  %141 = vmatprep.subr.mxu0 0.0
  %142 = vmatpush1.xpose.msra.mxu0 %v98
  %143 = vmatprep.subr.mxu0 0.0
  %144 = vmatpush1.xpose.msra.mxu0 %v101
  %145 = vmatprep.subr.mxu0 0.0
  %146 = vmatpush1.xpose.msra.mxu0 %v104
  %147 = vmatprep.subr.mxu0 0.0
  %148 = vmatpush1.xpose.msra.mxu0 %v107
  %149 = vmatprep.subr.mxu0 0.0
  %150 = vmatpush1.xpose.msra.mxu0 %v110
  %151 = vmatprep.subr.mxu0 0.0
  %152 = vmatpush1.xpose.msra.mxu0 %v113
  %153 = vmatprep.subr.mxu0 0.0
  %154 = vmatpush1.xpose.msra.mxu0 %v116
  %155 = vmatprep.subr.mxu0 0.0
  %156 = vmatpush1.xpose.msra.mxu0 %v119
  %157 = vmatprep.subr.mxu0 0.0
  %158 = vmatpush1.xpose.msra.mxu0 %v122
  %159 = vmatprep.subr.mxu0 0.0
  %160 = vmatpush1.xpose.msra.mxu0 %v125
  %161 = vmatprep.subr.mxu0 0.0
  %162 = vmatpush1.xpose.msra.mxu0 %v128
  %163 = vmatprep.subr.mxu0 0.0
  %164 = vmatpush1.xpose.msra.mxu0 %v131
  %165 = vmatprep.subr.mxu0 0.0
  %166 = vmatpush1.xpose.msra.mxu0 0.0
  %167 = vmatprep.subr.mxu0 0.0
  %168 = vmatpush1.xpose.msra.mxu0 0.0
  %169 = vmatprep.subr.mxu0 0.0
  %170 = vmatpush1.xpose.msra.mxu0 0.0
  %171 = vmatprep.subr.mxu0 0.0
  %172 = vmatpush1.xpose.msra.mxu0 0.0
  %173 = vmatprep.subr.mxu0 0.0
  %174 = vmatpush1.xpose.msra.mxu0 0.0
  %175 = vmatprep.subr.mxu0 0.0
  %176 = vmatpush1.xpose.msra.mxu0 0.0
  %177 = vmatprep.subr.mxu0 0.0
  %178 = vmatpush1.xpose.msra.mxu0 0.0
  %179 = vmatprep.subr.mxu0 0.0
  %180 = vmatpush1.xpose.msra.mxu0 0.0
  %181 = vmatprep.subr.mxu0 0.0
  %182 = vmatpush1.xpose.msra.mxu0 0.0
  %183 = vmatprep.subr.mxu0 0.0
  %184 = vmatpush1.xpose.msra.mxu0 0.0
  %185 = vmatprep.subr.mxu0 0.0
  %186 = vmatpush1.xpose.msra.mxu0 0.0
  %187 = vmatprep.subr.mxu0 0.0
  %188 = vmatpush1.xpose.msra.mxu0 0.0
  %189 = vmatprep.subr.mxu0 0.0
  %190 = vmatpush1.xpose.msra.mxu0 0.0
  %191 = vmatprep.subr.mxu0 0.0
  %192 = vmatpush1.xpose.msra.mxu0 0.0
  %193 = vmatprep.subr.mxu0 0.0
  %194 = vmatpush1.xpose.msra.mxu0 0.0
  %195 = vmatprep.subr.mxu0 0.0
  %196 = vmatpush1.xpose.msra.mxu0 0.0
  %197 = vmatprep.mubr.f32.mxu0 0.0
  %198 = vmatmul.mubr.f32.gmra.mrb[0].mxu0 %v74
  %v199 = vpop.f32.mrb[0].mxu0
  %v200 = vadd.f32 %v55, %v199
  %v201 = vpop.f32.mrb[0].mxu0
  %202 = vmatprep.mubr.f32.mxu0 0.0
  %203 = vmatmul.mubr.f32.gmra.mrb[0].mxu0 %v77
  %v204 = vpop.f32.mrb[0].mxu0
  %v205 = vadd.f32 %v60, %v204
  %v206 = vpop.f32.mrb[0].mxu0
  %207 = vmatprep.mubr.f32.mxu0 0.0
  %208 = vmatmul.mubr.f32.gmra.mrb[0].mxu0 %v80
  %v209 = vpop.f32.mrb[0].mxu0
  %v210 = vadd.f32 %v65, %v209
  %v211 = vpop.f32.mrb[0].mxu0
  %212 = vmatprep.mubr.f32.mxu0 0.0
  %213 = vmatmul.mubr.f32.gmra.mrb[0].mxu0 %v83
  %v214 = vpop.f32.mrb[0].mxu0
  %v215 = vadd.f32 %v70, %v214
  %v216 = vpop.f32.mrb[0].mxu0
  %217 = vdwg.mxu0
  %v218 = vmax.f32 %v200, 0.0
  %v219 = vmax.f32 %v205, 0.0
  %v220 = vmax.f32 %v210, 0.0
  %v221 = vmax.f32 %v215, 0.0
  %v222 = vld [vmem:[%s3] sm:$0xff]
  %v223 = vld [vmem:[%s3 + $0x8] sm:$0xff]
  %v224 = vld [vmem:[%s4] sm:$0xff]
  %v225 = vld [vmem:[%s4 + $0x8] sm:$0xff]
  %227 = vset.pattern.permute.xlu0 0
  %228 = vperm.xlu0 %227, %v224
  %v229 = vpop.permute.xlu0 %228
  %232 = vset.pattern.permute.xlu0 0
  %233 = vperm.xlu0 %232, %v225
  %v234 = vpop.permute.xlu0 %233
  %vm236 = vcmask 261120
  %v238 = vsel %vm236, %v222, 0
  %v241 = vsel %vm236, %v223, 0
  %243 = vmatprep.subr.mxu0 0.0
  %244 = vmatpush1.msra.mxu0 %v218
  %245 = vmatprep.subr.mxu0 0.0
  %246 = vmatpush1.msra.mxu0 %v219
  %247 = vmatprep.subr.mxu0 0.0
  %248 = vmatpush1.msra.mxu0 %v220
  %249 = vmatprep.subr.mxu0 0.0
  %250 = vmatpush1.msra.mxu0 %v221
  %251 = vmatprep.subr.mxu0 0.0
  %252 = vmatpush1.msra.mxu0 0.0
  %253 = vmatprep.subr.mxu0 0.0
  %254 = vmatpush1.msra.mxu0 0.0
  %255 = vmatprep.subr.mxu0 0.0
  %256 = vmatpush1.msra.mxu0 0.0
  %257 = vmatprep.subr.mxu0 0.0
  %258 = vmatpush1.msra.mxu0 0.0
  %259 = vmatprep.subr.mxu0 0.0
  %260 = vmatpush1.msra.mxu0 0.0
  %261 = vmatprep.subr.mxu0 0.0
  %262 = vmatpush1.msra.mxu0 0.0
  %263 = vmatprep.subr.mxu0 0.0
  %264 = vmatpush1.msra.mxu0 0.0
  %265 = vmatprep.subr.mxu0 0.0
  %266 = vmatpush1.msra.mxu0 0.0
  %267 = vmatprep.subr.mxu0 0.0
  %268 = vmatpush1.msra.mxu0 0.0
  %269 = vmatprep.subr.mxu0 0.0
  %270 = vmatpush1.msra.mxu0 0.0
  %271 = vmatprep.subr.mxu0 0.0
  %272 = vmatpush1.msra.mxu0 0.0
  %273 = vmatprep.subr.mxu0 0.0
  %274 = vmatpush1.msra.mxu0 0.0
  %275 = vmatprep.subr.mxu0 0.0
  %276 = vmatpush1.msra.mxu0 0.0
  %277 = vmatprep.subr.mxu0 0.0
  %278 = vmatpush1.msra.mxu0 0.0
  %279 = vmatprep.subr.mxu0 0.0
  %280 = vmatpush1.msra.mxu0 0.0
  %281 = vmatprep.subr.mxu0 0.0
  %282 = vmatpush1.msra.mxu0 0.0
  %283 = vmatprep.subr.mxu0 0.0
  %284 = vmatpush1.msra.mxu0 0.0
  %285 = vmatprep.subr.mxu0 0.0
  %286 = vmatpush1.msra.mxu0 0.0
  %287 = vmatprep.subr.mxu0 0.0
  %288 = vmatpush1.msra.mxu0 0.0
  %289 = vmatprep.subr.mxu0 0.0
  %290 = vmatpush1.msra.mxu0 0.0
  %291 = vmatprep.subr.mxu0 0.0
  %292 = vmatpush1.msra.mxu0 0.0
  %293 = vmatprep.subr.mxu0 0.0
  %294 = vmatpush1.msra.mxu0 0.0
  %295 = vmatprep.subr.mxu0 0.0
  %296 = vmatpush1.msra.mxu0 0.0
  %297 = vmatprep.subr.mxu0 0.0
  %298 = vmatpush1.msra.mxu0 0.0
  %299 = vmatprep.subr.mxu0 0.0
  %300 = vmatpush1.msra.mxu0 0.0
  %301 = vmatprep.subr.mxu0 0.0
  %302 = vmatpush1.msra.mxu0 0.0
  %303 = vmatprep.subr.mxu0 0.0
  %304 = vmatpush1.msra.mxu0 0.0
  %305 = vmatprep.subr.mxu0 0.0
  %306 = vmatpush1.msra.mxu0 0.0
  %307 = vmatprep.mubr.f32.mxu0 0.0
  %308 = vmatmul.mubr.f32.gmra.mrb[0].mxu0 %v238
  %v309 = vpop.f32.mrb[0].mxu0
  %v310 = vadd.f32 %v229, %v309
  %v311 = vpop.f32.mrb[0].mxu0
  %312 = vmatprep.mubr.f32.mxu0 0.0
  %313 = vmatmul.mubr.f32.gmra.mrb[0].mxu0 %v241
  %v314 = vpop.f32.mrb[0].mxu0
  %v315 = vadd.f32 %v234, %v314
  %v316 = vpop.f32.mrb[0].mxu0
  %317 = vdwg.mxu0
  %v318 = vmax.f32 %v310, 0.0
  %v319 = vmax.f32 %v315, 0.0
  %v320 = vld [vmem:[%s5] sm:$0x1]
  %v321 = vld [vmem:[#allocation2] sm:$0x1]
  %323 = vset.pattern.permute.xlu0 0
  %324 = vperm.xlu0 %323, %v321
  %v325 = vpop.permute.xlu0 %324
  %v327 = vlaneseq
  %v328 = vshrl.u32 %v327, 7
  %v329 = vsub.s32 0, %v328
  %v330 = vrot.slane %v325, %v329
  %vm331 = vcmask 130048
  %v333 = vsel %vm331, %v320, 0
  %335 = vmatprep.subr.mxu0 0.0
  %336 = vmatpush1.msra.mxu0 %v318
  %337 = vmatprep.subr.mxu0 0.0
  %338 = vmatpush1.msra.mxu0 %v319
  %339 = vmatprep.subr.mxu0 0.0
  %340 = vmatpush1.msra.mxu0 0.0
  %341 = vmatprep.subr.mxu0 0.0
  %342 = vmatpush1.msra.mxu0 0.0
  %343 = vmatprep.subr.mxu0 0.0
  %344 = vmatpush1.msra.mxu0 0.0
  %345 = vmatprep.subr.mxu0 0.0
  %346 = vmatpush1.msra.mxu0 0.0
  %347 = vmatprep.subr.mxu0 0.0
  %348 = vmatpush1.msra.mxu0 0.0
  %349 = vmatprep.subr.mxu0 0.0
  %350 = vmatpush1.msra.mxu0 0.0
  %351 = vmatprep.subr.mxu0 0.0
  %352 = vmatpush1.msra.mxu0 0.0
  %353 = vmatprep.subr.mxu0 0.0
  %354 = vmatpush1.msra.mxu0 0.0
  %355 = vmatprep.subr.mxu0 0.0
  %356 = vmatpush1.msra.mxu0 0.0
  %357 = vmatprep.subr.mxu0 0.0
  %358 = vmatpush1.msra.mxu0 0.0
  %359 = vmatprep.subr.mxu0 0.0
  %360 = vmatpush1.msra.mxu0 0.0
  %361 = vmatprep.subr.mxu0 0.0
  %362 = vmatpush1.msra.mxu0 0.0
  %363 = vmatprep.subr.mxu0 0.0
  %364 = vmatpush1.msra.mxu0 0.0
  %365 = vmatprep.subr.mxu0 0.0
  %366 = vmatpush1.msra.mxu0 0.0
  %367 = vmatprep.subr.mxu0 0.0
  %368 = vmatpush1.msra.mxu0 0.0
  %369 = vmatprep.subr.mxu0 0.0
  %370 = vmatpush1.msra.mxu0 0.0
  %371 = vmatprep.subr.mxu0 0.0
  %372 = vmatpush1.msra.mxu0 0.0
  %373 = vmatprep.subr.mxu0 0.0
  %374 = vmatpush1.msra.mxu0 0.0
  %375 = vmatprep.subr.mxu0 0.0
  %376 = vmatpush1.msra.mxu0 0.0
  %377 = vmatprep.subr.mxu0 0.0
  %378 = vmatpush1.msra.mxu0 0.0
  %379 = vmatprep.subr.mxu0 0.0
  %380 = vmatpush1.msra.mxu0 0.0
  %381 = vmatprep.subr.mxu0 0.0
  %382 = vmatpush1.msra.mxu0 0.0
  %383 = vmatprep.subr.mxu0 0.0
  %384 = vmatpush1.msra.mxu0 0.0
  %385 = vmatprep.subr.mxu0 0.0
  %386 = vmatpush1.msra.mxu0 0.0
  %387 = vmatprep.subr.mxu0 0.0
  %388 = vmatpush1.msra.mxu0 0.0
  %389 = vmatprep.subr.mxu0 0.0
  %390 = vmatpush1.msra.mxu0 0.0
  %391 = vmatprep.subr.mxu0 0.0
  %392 = vmatpush1.msra.mxu0 0.0
  %393 = vmatprep.subr.mxu0 0.0
  %394 = vmatpush1.msra.mxu0 0.0
  %395 = vmatprep.subr.mxu0 0.0
  %396 = vmatpush1.msra.mxu0 0.0
  %397 = vmatprep.subr.mxu0 0.0
  %398 = vmatpush1.msra.mxu0 0.0
  %399 = vmatprep.mubr.f32.mxu0 0.0
  %400 = vmatmul.mubr.f32.gmra.mrb[0].mxu0 %v333
  %v401 = vpop.f32.mrb[0].mxu0
  %v402 = vadd.f32 %v330, %v401
  %v403 = vpop.f32.mrb[0].mxu0
  %404 = vdwg.mxu0
  %v405 = vxor.u32 %v402, 2147483648
  %v406 = vmul.f32 %v405, 1.442695
  %v407 = vpow.pop %v406
  %v408 = vadd.f32 %v407, 1.0
  %v409 = vrcp.pop %v408
  %v410 = vmul.f32 1.0, %v409
  %411 = vst [vmem:[%s7] sm:$0x1] %v410
  // Predicated region
  $region30: #{ctest_mlr_forward.1} parent=0 // pred_check
    _
  $region31: #{ctest_mlr_forward.1} parent=0 // pred_check_branch
    %413 = sbr.rel (0) target = $region33
  $region32: #{ctest_mlr_forward.1} parent=0 // pred_region
    _
  $region33: #{ctest_mlr_forward.1} parent=0 // pred_fallthru
    _
  // Predicated region
  $region34: #{ctest_mlr_forward.1} parent=0 // pred_check
    _
  $region35: #{ctest_mlr_forward.1} parent=0 // pred_check_branch
    %415 = sbr.rel (0) target = $region37
  $region36: #{ctest_mlr_forward.1} parent=0 // pred_region
    _
  $region37: #{ctest_mlr_forward.1} parent=0 // pred_fallthru
    _

</llo_original>
